<compile_context>
chip_gen: v7x
topology: tpu7x:2x2x1
jax: 0.10.0
libtpu: 0.0.40
codegen_flags: <defaults>
</compile_context>

<pallas_src>
import functools

import jax
import jax.numpy as jnp
from jax import lax
from jax.experimental import pallas as pl
from jax.experimental.pallas import tpu as pltpu

_LANE = 128


def _vmem_capacity_bytes():
    """Per-core VMEM capacity; conservative fallback (v7x) if the query fails."""
    try:
        return int(pltpu.get_tpu_info().vmem_capacity_bytes)
    except Exception:
        return 64 * 1024 * 1024


def _pick_row_tile(T):
    """Largest multiple-of-8 divisor of T that is <= 256 and leaves >= 2 row
    blocks when T allows it (megacore sharding on v7x); falls back to T."""
    if T <= 8:
        return T
    limit = min(256, max(8, T // 2))
    start = limit - (limit % 8)
    for d in range(start, 7, -8):
        if T % d == 0:
            return d
    # TODO(synk): very large T that has no multiple-of-8 divisor stays a single
    # row block; tile with an in-kernel row mask if that case ever matters.
    return T


def _watermark_loss_kernel(x_ref, v_ref, b_ref, loss_ref, acc_ref,
                           *, m_total, block_k, unroll):
    """x_ref: (tT, tk), v_ref: (1, tk), b_ref: (tT, 1), loss_ref: (tT, 1),
    acc_ref: (tT, 128) f32 lane-dense partial-sum accumulator.
    Grid: (row blocks [parallel], K blocks [arbitrary])."""
    k = pl.program_id(1)

    @pl.when(k == 0)
    def _():
        acc_ref[...] = jnp.zeros_like(acc_ref)

    nsub = block_k // _LANE
    mask_needed = (m_total % block_k) != 0

    if mask_needed:
        # Loop-invariant pieces of the column mask (hoisted once per grid step).
        lane_iota = lax.broadcasted_iota(jnp.int32, (1, _LANE), 1)
        col_base = k * block_k

    def body(j, carry):
        lo = pl.multiple_of(j * _LANE, _LANE)
        xj = x_ref[:, pl.ds(lo, _LANE)].astype(jnp.float32)   # (tT, 128)
        vj = v_ref[:, pl.ds(lo, _LANE)].astype(jnp.float32)   # (1, 128) -> bcast
        contrib = xj * vj
        if mask_needed:
            # Zero out-of-range columns of the (possibly ragged) last K block.
            cols = lane_iota + (col_base + lo)
            contrib = jnp.where(cols < m_total, contrib, 0.0)
        acc_ref[...] += contrib
        return carry

    lax.fori_loop(0, nsub, body, 0, unroll=unroll)

    @pl.when(k == pl.num_programs(1) - 1)
    def _():
        # One XLU lane-reduce for the logits, then stable logit-space BCE.
        z = jnp.sum(acc_ref[...], axis=-1, keepdims=True)     # (tT, 1)
        b = b_ref[...]                                        # (tT, 1)
        per_bit = (jnp.maximum(z, 0.0)
                   - b * z
                   + jnp.log1p(jnp.exp(-jnp.abs(z))))
        loss_ref[...] = per_bit


@jax.jit
def watermark_loss(X, conv1, b):
    """X: (T, M), conv1: (N, H) with N*H == M, b: (T,)  ->  scalar f32 loss."""
    T, M = X.shape
    assert conv1.size == M, "conv1.flatten() length must match X's second dim"

    x_itemsize = jnp.dtype(X.dtype).itemsize
    v_itemsize = jnp.dtype(conv1.dtype).itemsize

    # --- generation-aware tile sizing (HBM-bound => biggest block that leaves
    # --- double-buffering headroom even on v7x's 64 MiB VMEM) ---------------
    vmem_cap = _vmem_capacity_bytes()
    target_block_bytes = int(min(8 << 20, max(2 << 20, vmem_cap // 8)))

    tT = _pick_row_tile(T)
    grid_t = T // tT

    m_lanes = pl.cdiv(M, _LANE) * _LANE
    tk = (target_block_bytes // max(tT * x_itemsize, 1)) // _LANE * _LANE
    tk = int(max(_LANE, min(tk, m_lanes)))
    grid_k = pl.cdiv(M, tk)          # ragged last block is masked in-kernel

    nsub = tk // _LANE
    unroll = nsub if nsub <= 8 else 8

    # Explicit VMEM budget: 2x double-buffered X block + v tiles + acc + b/out.
    x_block_bytes = tT * tk * x_itemsize
    vmem_need = (2 * x_block_bytes + 2 * tk * v_itemsize
                 + tT * _LANE * 4 + 4 * tT * 4)
    vmem_limit = int(min(vmem_cap * 3 // 4, max(vmem_need + (4 << 20), 32 << 20)))

    # Row-major flatten of conv1 (node-major, hidden-minor) as a lane-dense row.
    v = conv1.reshape(1, M)                 # keep upstream dtype; cast in-kernel
    b2 = b.reshape(T, 1).astype(jnp.float32)

    kernel = functools.partial(_watermark_loss_kernel,
                               m_total=M, block_k=tk, unroll=unroll)

    per_row = pl.pallas_call(
        kernel,
        out_shape=jax.ShapeDtypeStruct((T, 1), jnp.float32),
        grid_spec=pltpu.PrefetchScalarGridSpec(
            num_scalar_prefetch=0,
            grid=(grid_t, grid_k),
            in_specs=[
                pl.BlockSpec((tT, tk), lambda t, k: (t, k)),   # X tile (upstream dtype)
                pl.BlockSpec((1, tk), lambda t, k: (0, k)),    # flattened conv1 tile
                pl.BlockSpec((tT, 1), lambda t, k: (t, 0)),    # b rows (resident per t)
            ],
            out_specs=pl.BlockSpec((tT, 1), lambda t, k: (t, 0)),
            scratch_shapes=[pltpu.VMEM((tT, _LANE), jnp.float32)],
        ),
        compiler_params=pltpu.CompilerParams(
            dimension_semantics=("parallel", "arbitrary"),
            vmem_limit_bytes=vmem_limit,
        ),
        cost_estimate=pl.CostEstimate(
            flops=2 * T * M,
            bytes_accessed=T * M * x_itemsize + M * v_itemsize + 2 * T * 4,
            transcendentals=2 * T,
        ),
    )(X, v, b2)

    return jnp.sum(per_row)


def watermark_loss_ref(X, conv1, b):
    """Pure-JAX reference with the module's literal (naive) formulation.
    NOTE: the naive log(sigmoid) form goes to -inf/NaN once logits saturate;
    the kernel uses the equivalent stable logit-space BCE, so inputs for this
    comparison are kept in sigmoid's non-saturated range."""
    v = conv1.reshape(-1).astype(jnp.float32)
    y = jax.nn.sigmoid(X.astype(jnp.float32) @ v)
    b = b.astype(jnp.float32)
    return -jnp.sum(b * jnp.log(y) + (1.0 - b) * jnp.log(1.0 - y))


if __name__ == "__main__":
    key = jax.random.PRNGKey(0)

    # --- Case 1: shapes consistent with the module (GCN conv1 output (N, H)
    # --- with H=16, T=128 watermark bits, X from the 'random' generator) -----
    T, N, H = 128, 64, 16
    M = N * H
    kx, kc, kx2, kc2 = jax.random.split(key, 4)
    X = jax.random.normal(kx, (T, M), dtype=jnp.float32)
    # conv1 output is post-ReLU; scale so the naive reference stays finite
    # (the kernel itself is stable for any magnitude).
    conv1 = jax.nn.relu(jax.random.normal(kc, (N, H), dtype=jnp.float32)) * 0.05
    b = jnp.ones((T,), dtype=jnp.float32)

    loss = jax.block_until_ready(watermark_loss(X, conv1, b))
    ref = watermark_loss_ref(X, conv1, b)
    assert jnp.isfinite(loss), ("loss is not finite", loss)
    assert jnp.allclose(loss, ref, rtol=1e-4, atol=1e-3), (loss, ref)

    # --- Case 2: ragged M (not a multiple of 128) exercises the in-kernel
    # --- column mask that replaced the wrapper-side jnp.pad of X -------------
    T2, N2, H2 = 96, 125, 8           # M2 = 1000
    M2 = N2 * H2
    X2 = jax.random.normal(kx2, (T2, M2), dtype=jnp.float32)
    conv1_2 = jax.nn.relu(jax.random.normal(kc2, (N2, H2), dtype=jnp.float32)) * 0.05
    b2 = jnp.ones((T2,), dtype=jnp.float32)

    loss2 = jax.block_until_ready(watermark_loss(X2, conv1_2, b2))
    ref2 = watermark_loss_ref(X2, conv1_2, b2)
    assert jnp.isfinite(loss2), ("loss2 is not finite", loss2)
    assert jnp.allclose(loss2, ref2, rtol=1e-4, atol=1e-3), (loss2, ref2)

    print("KERNEL_OK")
</pallas_src>

<mosaic_0001>
module attributes {stable_mosaic.version = 11 : i64} {
  func.func @_watermark_loss_kernel(%arg0: i32, %arg1: i32, %arg2: memref<64x1024xf32, #tpu.memory_space<vmem>>, %arg3: memref<1x1024xf32, #tpu.memory_space<vmem>>, %arg4: memref<64x1xf32, #tpu.memory_space<vmem>>, %arg5: memref<64x1xf32, #tpu.memory_space<vmem>>, %arg6: memref<64x128xf32, #tpu.memory_space<vmem>>) attributes {dimension_semantics = [#tpu.dimension_semantics<parallel>, #tpu.dimension_semantics<arbitrary>], iteration_bounds = array<i64: 2, 1>, scalar_prefetch = 0 : i64, scratch_operands = 1 : i64, tpu.core_type = #tpu.core_type<tc>, window_params = [{transform_indices = @transform_0, window_bounds = array<i64: 64, 1024>}, {transform_indices = @transform_1, window_bounds = array<i64: 1, 1024>}, {transform_indices = @transform_2, window_bounds = array<i64: 64, 1>}, {transform_indices = @transform_3, window_bounds = array<i64: 64, 1>}]} {
    %c0_i32 = arith.constant 0 : i32
    %0 = arith.cmpi eq, %arg1, %c0_i32 : i32
    %1 = arith.extui %0 : i1 to i32
    %c0_i32_0 = arith.constant 0 : i32
    %2 = arith.cmpi ne, %1, %c0_i32_0 : i32
    scf.if %2 {
      %cst = arith.constant 0.000000e+00 : f32
      %94 = vector.broadcast %cst : f32 to vector<64x128xf32>
      %c0_58 = arith.constant 0 : index
      %c0_59 = arith.constant 0 : index
      %95 = vector.load %arg6[%c0_58, %c0_59] : memref<64x128xf32, #tpu.memory_space<vmem>>, vector<64x128xf32>
      tpu.vector_store %arg6[%c0_58, %c0_59], %94 {strides = array<i32>} : memref<64x128xf32, #tpu.memory_space<vmem>>, vector<64x128xf32>,
    } else {
    }
    %c0_i32_1 = arith.constant 0 : i32
    %c128_i32 = arith.constant 128 : i32
    %3 = arith.muli %c0_i32_1, %c128_i32 : i32
    %4 = tpu.assume_multiple %3, 128 : i32
    %c0 = arith.constant 0 : index
    %5 = arith.index_cast %4 : i32 to index
    %6 = vector.load %arg2[%c0, %5] : memref<64x1024xf32, #tpu.memory_space<vmem>>, vector<64x128xf32>
    %c0_2 = arith.constant 0 : index
    %7 = arith.index_cast %4 : i32 to index
    %8 = vector.load %arg3[%c0_2, %7] : memref<1x1024xf32, #tpu.memory_space<vmem>>, vector<1x128xf32>
    %9 = vector.broadcast %8 : vector<1x128xf32> to vector<64x128xf32>
    %10 = arith.mulf %6, %9 : vector<64x128xf32>
    %c0_3 = arith.constant 0 : index
    %c0_4 = arith.constant 0 : index
    %11 = vector.load %arg6[%c0_3, %c0_4] : memref<64x128xf32, #tpu.memory_space<vmem>>, vector<64x128xf32>
    %12 = arith.addf %11, %10 : vector<64x128xf32>
    %c0_5 = arith.constant 0 : index
    %c0_6 = arith.constant 0 : index
    %13 = vector.load %arg6[%c0_5, %c0_6] : memref<64x128xf32, #tpu.memory_space<vmem>>, vector<64x128xf32>
    tpu.vector_store %arg6[%c0_5, %c0_6], %12 {strides = array<i32>} : memref<64x128xf32, #tpu.memory_space<vmem>>, vector<64x128xf32>,
    %c1_i32 = arith.constant 1 : i32
    %c128_i32_7 = arith.constant 128 : i32
    %14 = arith.muli %c1_i32, %c128_i32_7 : i32
    %15 = tpu.assume_multiple %14, 128 : i32
    %c0_8 = arith.constant 0 : index
    %16 = arith.index_cast %15 : i32 to index
    %17 = vector.load %arg2[%c0_8, %16] : memref<64x1024xf32, #tpu.memory_space<vmem>>, vector<64x128xf32>
    %c0_9 = arith.constant 0 : index
    %18 = arith.index_cast %15 : i32 to index
    %19 = vector.load %arg3[%c0_9, %18] : memref<1x1024xf32, #tpu.memory_space<vmem>>, vector<1x128xf32>
    %20 = vector.broadcast %19 : vector<1x128xf32> to vector<64x128xf32>
    %21 = arith.mulf %17, %20 : vector<64x128xf32>
    %c0_10 = arith.constant 0 : index
    %c0_11 = arith.constant 0 : index
    %22 = vector.load %arg6[%c0_10, %c0_11] : memref<64x128xf32, #tpu.memory_space<vmem>>, vector<64x128xf32>
    %23 = arith.addf %22, %21 : vector<64x128xf32>
    %c0_12 = arith.constant 0 : index
    %c0_13 = arith.constant 0 : index
    %24 = vector.load %arg6[%c0_12, %c0_13] : memref<64x128xf32, #tpu.memory_space<vmem>>, vector<64x128xf32>
    tpu.vector_store %arg6[%c0_12, %c0_13], %23 {strides = array<i32>} : memref<64x128xf32, #tpu.memory_space<vmem>>, vector<64x128xf32>,
    %c2_i32 = arith.constant 2 : i32
    %c128_i32_14 = arith.constant 128 : i32
    %25 = arith.muli %c2_i32, %c128_i32_14 : i32
    %26 = tpu.assume_multiple %25, 128 : i32
    %c0_15 = arith.constant 0 : index
    %27 = arith.index_cast %26 : i32 to index
    %28 = vector.load %arg2[%c0_15, %27] : memref<64x1024xf32, #tpu.memory_space<vmem>>, vector<64x128xf32>
    %c0_16 = arith.constant 0 : index
    %29 = arith.index_cast %26 : i32 to index
    %30 = vector.load %arg3[%c0_16, %29] : memref<1x1024xf32, #tpu.memory_space<vmem>>, vector<1x128xf32>
    %31 = vector.broadcast %30 : vector<1x128xf32> to vector<64x128xf32>
    %32 = arith.mulf %28, %31 : vector<64x128xf32>
    %c0_17 = arith.constant 0 : index
    %c0_18 = arith.constant 0 : index
    %33 = vector.load %arg6[%c0_17, %c0_18] : memref<64x128xf32, #tpu.memory_space<vmem>>, vector<64x128xf32>
    %34 = arith.addf %33, %32 : vector<64x128xf32>
    %c0_19 = arith.constant 0 : index
    %c0_20 = arith.constant 0 : index
    %35 = vector.load %arg6[%c0_19, %c0_20] : memref<64x128xf32, #tpu.memory_space<vmem>>, vector<64x128xf32>
    tpu.vector_store %arg6[%c0_19, %c0_20], %34 {strides = array<i32>} : memref<64x128xf32, #tpu.memory_space<vmem>>, vector<64x128xf32>,
    %c3_i32 = arith.constant 3 : i32
    %c128_i32_21 = arith.constant 128 : i32
    %36 = arith.muli %c3_i32, %c128_i32_21 : i32
    %37 = tpu.assume_multiple %36, 128 : i32
    %c0_22 = arith.constant 0 : index
    %38 = arith.index_cast %37 : i32 to index
    %39 = vector.load %arg2[%c0_22, %38] : memref<64x1024xf32, #tpu.memory_space<vmem>>, vector<64x128xf32>
    %c0_23 = arith.constant 0 : index
    %40 = arith.index_cast %37 : i32 to index
    %41 = vector.load %arg3[%c0_23, %40] : memref<1x1024xf32, #tpu.memory_space<vmem>>, vector<1x128xf32>
    %42 = vector.broadcast %41 : vector<1x128xf32> to vector<64x128xf32>
    %43 = arith.mulf %39, %42 : vector<64x128xf32>
    %c0_24 = arith.constant 0 : index
    %c0_25 = arith.constant 0 : index
    %44 = vector.load %arg6[%c0_24, %c0_25] : memref<64x128xf32, #tpu.memory_space<vmem>>, vector<64x128xf32>
    %45 = arith.addf %44, %43 : vector<64x128xf32>
    %c0_26 = arith.constant 0 : index
    %c0_27 = arith.constant 0 : index
    %46 = vector.load %arg6[%c0_26, %c0_27] : memref<64x128xf32, #tpu.memory_space<vmem>>, vector<64x128xf32>
    tpu.vector_store %arg6[%c0_26, %c0_27], %45 {strides = array<i32>} : memref<64x128xf32, #tpu.memory_space<vmem>>, vector<64x128xf32>,
    %c4_i32 = arith.constant 4 : i32
    %c128_i32_28 = arith.constant 128 : i32
    %47 = arith.muli %c4_i32, %c128_i32_28 : i32
    %48 = tpu.assume_multiple %47, 128 : i32
    %c0_29 = arith.constant 0 : index
    %49 = arith.index_cast %48 : i32 to index
    %50 = vector.load %arg2[%c0_29, %49] : memref<64x1024xf32, #tpu.memory_space<vmem>>, vector<64x128xf32>
    %c0_30 = arith.constant 0 : index
    %51 = arith.index_cast %48 : i32 to index
    %52 = vector.load %arg3[%c0_30, %51] : memref<1x1024xf32, #tpu.memory_space<vmem>>, vector<1x128xf32>
    %53 = vector.broadcast %52 : vector<1x128xf32> to vector<64x128xf32>
    %54 = arith.mulf %50, %53 : vector<64x128xf32>
    %c0_31 = arith.constant 0 : index
    %c0_32 = arith.constant 0 : index
    %55 = vector.load %arg6[%c0_31, %c0_32] : memref<64x128xf32, #tpu.memory_space<vmem>>, vector<64x128xf32>
    %56 = arith.addf %55, %54 : vector<64x128xf32>
    %c0_33 = arith.constant 0 : index
    %c0_34 = arith.constant 0 : index
    %57 = vector.load %arg6[%c0_33, %c0_34] : memref<64x128xf32, #tpu.memory_space<vmem>>, vector<64x128xf32>
    tpu.vector_store %arg6[%c0_33, %c0_34], %56 {strides = array<i32>} : memref<64x128xf32, #tpu.memory_space<vmem>>, vector<64x128xf32>,
    %c5_i32 = arith.constant 5 : i32
    %c128_i32_35 = arith.constant 128 : i32
    %58 = arith.muli %c5_i32, %c128_i32_35 : i32
    %59 = tpu.assume_multiple %58, 128 : i32
    %c0_36 = arith.constant 0 : index
    %60 = arith.index_cast %59 : i32 to index
    %61 = vector.load %arg2[%c0_36, %60] : memref<64x1024xf32, #tpu.memory_space<vmem>>, vector<64x128xf32>
    %c0_37 = arith.constant 0 : index
    %62 = arith.index_cast %59 : i32 to index
    %63 = vector.load %arg3[%c0_37, %62] : memref<1x1024xf32, #tpu.memory_space<vmem>>, vector<1x128xf32>
    %64 = vector.broadcast %63 : vector<1x128xf32> to vector<64x128xf32>
    %65 = arith.mulf %61, %64 : vector<64x128xf32>
    %c0_38 = arith.constant 0 : index
    %c0_39 = arith.constant 0 : index
    %66 = vector.load %arg6[%c0_38, %c0_39] : memref<64x128xf32, #tpu.memory_space<vmem>>, vector<64x128xf32>
    %67 = arith.addf %66, %65 : vector<64x128xf32>
    %c0_40 = arith.constant 0 : index
    %c0_41 = arith.constant 0 : index
    %68 = vector.load %arg6[%c0_40, %c0_41] : memref<64x128xf32, #tpu.memory_space<vmem>>, vector<64x128xf32>
    tpu.vector_store %arg6[%c0_40, %c0_41], %67 {strides = array<i32>} : memref<64x128xf32, #tpu.memory_space<vmem>>, vector<64x128xf32>,
    %c6_i32 = arith.constant 6 : i32
    %c128_i32_42 = arith.constant 128 : i32
    %69 = arith.muli %c6_i32, %c128_i32_42 : i32
    %70 = tpu.assume_multiple %69, 128 : i32
    %c0_43 = arith.constant 0 : index
    %71 = arith.index_cast %70 : i32 to index
    %72 = vector.load %arg2[%c0_43, %71] : memref<64x1024xf32, #tpu.memory_space<vmem>>, vector<64x128xf32>
    %c0_44 = arith.constant 0 : index
    %73 = arith.index_cast %70 : i32 to index
    %74 = vector.load %arg3[%c0_44, %73] : memref<1x1024xf32, #tpu.memory_space<vmem>>, vector<1x128xf32>
    %75 = vector.broadcast %74 : vector<1x128xf32> to vector<64x128xf32>
    %76 = arith.mulf %72, %75 : vector<64x128xf32>
    %c0_45 = arith.constant 0 : index
    %c0_46 = arith.constant 0 : index
    %77 = vector.load %arg6[%c0_45, %c0_46] : memref<64x128xf32, #tpu.memory_space<vmem>>, vector<64x128xf32>
    %78 = arith.addf %77, %76 : vector<64x128xf32>
    %c0_47 = arith.constant 0 : index
    %c0_48 = arith.constant 0 : index
    %79 = vector.load %arg6[%c0_47, %c0_48] : memref<64x128xf32, #tpu.memory_space<vmem>>, vector<64x128xf32>
    tpu.vector_store %arg6[%c0_47, %c0_48], %78 {strides = array<i32>} : memref<64x128xf32, #tpu.memory_space<vmem>>, vector<64x128xf32>,
    %c7_i32 = arith.constant 7 : i32
    %c128_i32_49 = arith.constant 128 : i32
    %80 = arith.muli %c7_i32, %c128_i32_49 : i32
    %81 = tpu.assume_multiple %80, 128 : i32
    %c0_50 = arith.constant 0 : index
    %82 = arith.index_cast %81 : i32 to index
    %83 = vector.load %arg2[%c0_50, %82] : memref<64x1024xf32, #tpu.memory_space<vmem>>, vector<64x128xf32>
    %c0_51 = arith.constant 0 : index
    %84 = arith.index_cast %81 : i32 to index
    %85 = vector.load %arg3[%c0_51, %84] : memref<1x1024xf32, #tpu.memory_space<vmem>>, vector<1x128xf32>
    %86 = vector.broadcast %85 : vector<1x128xf32> to vector<64x128xf32>
    %87 = arith.mulf %83, %86 : vector<64x128xf32>
    %c0_52 = arith.constant 0 : index
    %c0_53 = arith.constant 0 : index
    %88 = vector.load %arg6[%c0_52, %c0_53] : memref<64x128xf32, #tpu.memory_space<vmem>>, vector<64x128xf32>
    %89 = arith.addf %88, %87 : vector<64x128xf32>
    %c0_54 = arith.constant 0 : index
    %c0_55 = arith.constant 0 : index
    %90 = vector.load %arg6[%c0_54, %c0_55] : memref<64x128xf32, #tpu.memory_space<vmem>>, vector<64x128xf32>
    tpu.vector_store %arg6[%c0_54, %c0_55], %89 {strides = array<i32>} : memref<64x128xf32, #tpu.memory_space<vmem>>, vector<64x128xf32>,
    %c8_i32 = arith.constant 8 : i32
    %c0_i32_56 = arith.constant 0 : i32
    %91 = arith.cmpi eq, %arg1, %c0_i32_56 : i32
    %92 = arith.extui %91 : i1 to i32
    %c0_i32_57 = arith.constant 0 : i32
    %93 = arith.cmpi ne, %92, %c0_i32_57 : i32
    scf.if %93 {
      %c0_58 = arith.constant 0 : index
      %c0_59 = arith.constant 0 : index
      %94 = vector.load %arg6[%c0_58, %c0_59] : memref<64x128xf32, #tpu.memory_space<vmem>>, vector<64x128xf32>
      %cst = arith.constant dense<0.000000e+00> : vector<64xf32>
      %95 = vector.multi_reduction <add>, %94, %cst [1] : vector<64x128xf32> to vector<64xf32>
      %96 = vector.shape_cast %95 : vector<64xf32> to vector<64x1xf32>
      %c0_60 = arith.constant 0 : index
      %c0_61 = arith.constant 0 : index
      %97 = vector.load %arg4[%c0_60, %c0_61] : memref<64x1xf32, #tpu.memory_space<vmem>>, vector<64x1xf32>
      %cst_62 = arith.constant 0.000000e+00 : f32
      %98 = vector.broadcast %cst_62 : f32 to vector<64x1xf32>
      %99 = arith.maximumf %96, %98 : vector<64x1xf32>
      %100 = arith.mulf %97, %96 : vector<64x1xf32>
      %101 = arith.subf %99, %100 : vector<64x1xf32>
      %102 = math.absf %96 : vector<64x1xf32>
      %cst_63 = arith.constant 0.000000e+00 : f32
      %103 = vector.broadcast %cst_63 : f32 to vector<64x1xf32>
      %104 = arith.subf %103, %102 : vector<64x1xf32>
      %105 = math.exp %104 : vector<64x1xf32>
      %106 = math.log1p %105 : vector<64x1xf32>
      %107 = arith.addf %101, %106 : vector<64x1xf32>
      %c0_64 = arith.constant 0 : index
      %c0_65 = arith.constant 0 : index
      %108 = vector.load %arg5[%c0_64, %c0_65] : memref<64x1xf32, #tpu.memory_space<vmem>>, vector<64x1xf32>
      tpu.vector_store %arg5[%c0_64, %c0_65], %107 {strides = array<i32>} : memref<64x1xf32, #tpu.memory_space<vmem>>, vector<64x1xf32>,
    } else {
    }
    return
  }
  func.func @transform_0(%arg0: i32, %arg1: i32) -> (i32, i32) {
    %c0_i32 = arith.constant 0 : i32
    return %arg0, %arg1 : i32, i32
  }
  func.func @transform_1(%arg0: i32, %arg1: i32) -> (i32, i32) {
    %c0_i32 = arith.constant 0 : i32
    %c0_i32_0 = arith.constant 0 : i32
    return %c0_i32, %arg1 : i32, i32
  }
  func.func @transform_2(%arg0: i32, %arg1: i32) -> (i32, i32) {
    %c0_i32 = arith.constant 0 : i32
    %c0_i32_0 = arith.constant 0 : i32
    return %arg0, %c0_i32 : i32, i32
  }
  func.func @transform_3(%arg0: i32, %arg1: i32) -> (i32, i32) {
    %c0_i32 = arith.constant 0 : i32
    %c0_i32_0 = arith.constant 0 : i32
    return %arg0, %c0_i32 : i32, i32
  }
}

</mosaic_0001>

<llo_original>
// kernel: watermark_loss.1
$region0: #{watermark_loss.1}
  #allocation0 [shape = 'u32[]', space=smem, size = 0x4, offset = 0x4, fixed_abs, tag = 'smem constant byte address 0x4 - core index']
  #allocation1 [shape = 'u32[144,128]{1,0:T(1,128)}', space=vmem, size = 0x12000, scoped, tag = 'internal scratch']
  #allocation2 [shape = 'f32[64,128]{1,0:T(8,128)}', space=vmem, size = 0x8000, scoped, tag = 'scratch operand']
  %s0 = inlined_call_operand.hbm [shape: f32[128,1024], index: 0, kind: input, shape index: {}]
  %s1 = inlined_call_operand.vmem [shape: f32[1,1024], index: 1, kind: input, shape index: {}]
  %s2 = inlined_call_operand.vmem [shape: f32[128,1], index: 2, kind: input, shape index: {}]
  %s3 = inlined_call_operand.vmem [shape: f32[128,1], index: 3, kind: output, shape index: {}]
  %s4 = sld [smem:[#allocation0]]
  $region57: #{watermark_loss.1} parent=0
    _
  %s6 = ssub.s32 1, %s4
  %s7 = scalar_select 0, %s6, %s4
  $region1: #{watermark_loss.1} parent=0
    #allocation3 [shape = 'u8[524288]{0}', space=vmem, size = 0x80000, scoped, tag = 'input window, operand 0']
    #allocation4 [shape = 's32[2]{0}', space=sflag, size = 0x8, scoped, tag = 'scoped memory for watermark_loss.1']
    %8 = vsyncpa [#allocation4], 0
    %s9 = scalar_lea.sflag [#allocation4], 1
    %10 = vsyncpa %s9, 0
    loop: start=0, step=1, limit=4
    $region2: #{watermark_loss.1} parent=1 // loop_pre_header
      _
    $region3: #{watermark_loss.1} parent=1 // loop_header
      %s12 = sphi 0, %s16
      %p13 = scmp.ge.s32.totalorder %s12, 4
      %s19 = sphi 0, %s31
      %s20 = sphi 0, %s27
      %s21 = sphi 0, %s19
      %s22 = sphi 0, %s20
      %s23 = sphi 0, %s21
      %s24 = sphi 0, %s22
      %s36 = sphi 0, %s38
      %s39 = sphi 0, %s36
      %s40 = sphi 0, %s39
      %s56 = sphi 0, %s40
      %s62 = sphi 0, %s64
      %s65 = sphi 0, %s62
      %s66 = sphi 0, %s65
      %s82 = sphi 0, %s66
      %s88 = sphi 0, %s90
      %s91 = sphi 0, %s88
      %s92 = sphi 0, %s91
      %s108 = sphi 0, %s92
      %s114 = sphi 0, %s116
      %s117 = sphi 0, %s114
      %s118 = sphi 0, %s117
      %s134 = sphi 0, %s118
    $region4: #{watermark_loss.1} parent=1 // loop_header_branch
      %15 = sbr.rel (%p13) target = $region8
    $region5: #{watermark_loss.1} parent=1 // loop_body
      %s17 = ssub.s32 %s12, 1
      %s18 = ssub.s32 %s12, 2
      %s25 = sadd.s32 1, %s20
      %p26 = scmp.ge.s32.totalorder %s25, 1
      %s27 = scalar_select %p26, 0, %s25
      %s28 = sadd.s32 1, %s19
      %s29 = scalar_select %p26, %s28, %s19
      %p30 = scmp.ge.s32.totalorder %s29, 2
      %s31 = scalar_select %p30, 0, %s29
      %s32 = ssub.s32 %s19, %s31
      %s33 = ssub.s32 %s20, %s27
      %s34 = sor.u32 %s32, %s33
      %p35 = scmp.eq.s32.totalorder %s34, 0
      %s37 = sadd.s32 %s36, 1
      %s38 = scalar_select %p35, %s36, %s37
      %p41 = pneg %p35
      %p42 = scmp.eq.s32.totalorder %s12, 1
      %p43 = por %p41, %p42
      %p44 = scmp.ne.s32.totalorder %s36, %s39
      %p45 = scmp.eq.s32.totalorder %s12, 0
      %p46 = por %p44, %p45
      %p47 = scmp.ne.s32.totalorder %s36, %s39
      %p48 = scmp.eq.s32.totalorder %s17, 1
      %p49 = por %p47, %p48
      %p50 = scmp.ne.s32.totalorder %s39, %s40
      %p51 = scmp.eq.s32.totalorder %s17, 0
      %p52 = por %p50, %p51
      %p53 = scmp.ne.s32.totalorder %s39, %s40
      %p54 = scmp.eq.s32.totalorder %s18, 1
      %p55 = por %p53, %p54
      %p57 = scmp.ne.s32.totalorder %s40, %s56
      %p58 = scmp.eq.s32.totalorder %s18, 0
      %p59 = por %p57, %p58
      %s60 = ssub.s32 %s20, %s27
      %p61 = scmp.eq.s32.totalorder %s60, 0
      %s63 = sadd.s32 %s62, 1
      %s64 = scalar_select %p61, %s62, %s63
      %p67 = pneg %p61
      %p68 = scmp.eq.s32.totalorder %s12, 1
      %p69 = por %p67, %p68
      %p70 = scmp.ne.s32.totalorder %s62, %s65
      %p71 = scmp.eq.s32.totalorder %s12, 0
      %p72 = por %p70, %p71
      %p73 = scmp.ne.s32.totalorder %s62, %s65
      %p74 = scmp.eq.s32.totalorder %s17, 1
      %p75 = por %p73, %p74
      %p76 = scmp.ne.s32.totalorder %s65, %s66
      %p77 = scmp.eq.s32.totalorder %s17, 0
      %p78 = por %p76, %p77
      %p79 = scmp.ne.s32.totalorder %s65, %s66
      %p80 = scmp.eq.s32.totalorder %s18, 1
      %p81 = por %p79, %p80
      %p83 = scmp.ne.s32.totalorder %s66, %s82
      %p84 = scmp.eq.s32.totalorder %s18, 0
      %p85 = por %p83, %p84
      %s86 = ssub.s32 %s19, %s31
      %p87 = scmp.eq.s32.totalorder %s86, 0
      %s89 = sadd.s32 %s88, 1
      %s90 = scalar_select %p87, %s88, %s89
      %p93 = pneg %p87
      %p94 = scmp.eq.s32.totalorder %s12, 1
      %p95 = por %p93, %p94
      %p96 = scmp.ne.s32.totalorder %s88, %s91
      %p97 = scmp.eq.s32.totalorder %s12, 0
      %p98 = por %p96, %p97
      %p99 = scmp.ne.s32.totalorder %s88, %s91
      %p100 = scmp.eq.s32.totalorder %s17, 1
      %p101 = por %p99, %p100
      %p102 = scmp.ne.s32.totalorder %s91, %s92
      %p103 = scmp.eq.s32.totalorder %s17, 0
      %p104 = por %p102, %p103
      %p105 = scmp.ne.s32.totalorder %s91, %s92
      %p106 = scmp.eq.s32.totalorder %s18, 1
      %p107 = por %p105, %p106
      %p109 = scmp.ne.s32.totalorder %s92, %s108
      %p110 = scmp.eq.s32.totalorder %s18, 0
      %p111 = por %p109, %p110
      %s112 = ssub.s32 %s19, %s31
      %p113 = scmp.eq.s32.totalorder %s112, 0
      %s115 = sadd.s32 %s114, 1
      %s116 = scalar_select %p113, %s114, %s115
      %p119 = pneg %p113
      %p120 = scmp.eq.s32.totalorder %s12, 1
      %p121 = por %p119, %p120
      %p122 = scmp.ne.s32.totalorder %s114, %s117
      %p123 = scmp.eq.s32.totalorder %s12, 0
      %p124 = por %p122, %p123
      %p125 = scmp.ne.s32.totalorder %s114, %s117
      %p126 = scmp.eq.s32.totalorder %s17, 1
      %p127 = por %p125, %p126
      %p128 = scmp.ne.s32.totalorder %s117, %s118
      %p129 = scmp.eq.s32.totalorder %s17, 0
      %p130 = por %p128, %p129
      %p131 = scmp.ne.s32.totalorder %s117, %s118
      %p132 = scmp.eq.s32.totalorder %s18, 1
      %p133 = por %p131, %p132
      %p135 = scmp.ne.s32.totalorder %s118, %s134
      %p136 = scmp.eq.s32.totalorder %s18, 0
      %p137 = por %p135, %p136
      %p138 = scmp.le.s32.totalorder 1, %s12
      %p139 = scmp.lt.s32.totalorder %s12, 3
      %p140 = pnand %p138, %p139
      %p141 = pneg %p140
      // Predicated region
      $region9: #{watermark_loss.1} parent=5 // pred_check
        _
      $region10: #{watermark_loss.1} parent=5 // pred_check_branch
        %143 = sbr.rel (%p140) target = $region12
      $region11: #{watermark_loss.1} parent=5 // pred_region
        %s144 = ssub.s32 %s12, 1
        // Predicated region
        $region13: #{watermark_loss.1} parent=11 // pred_check
          %p145 = pneg %p78
        $region14: #{watermark_loss.1} parent=11 // pred_check_branch
          %147 = sbr.rel (%p145) target = $region16
        $region15: #{watermark_loss.1} parent=11 // pred_region
          %s148 = smul.u32 8, %s22
          %p149 = scmp.lt.s32.totalorder %s148, 7
          %s150 = scalar_select %p149, %s148, 7
          %s151 = scalar_lea.vmem %s1, %s150
          %s152 = smul.u32 8, %s22
        $region16: #{watermark_loss.1} parent=11 // pred_fallthru
          _
      $region12: #{watermark_loss.1} parent=5 // pred_fallthru
        _
      %p153 = scmp.lt.s32.totalorder %s12, 2
      // Predicated region
      $region17: #{watermark_loss.1} parent=5 // pred_check
        %p154 = pneg %p153
      $region18: #{watermark_loss.1} parent=5 // pred_check_branch
        %156 = sbr.rel (%p154) target = $region20
      $region19: #{watermark_loss.1} parent=5 // pred_region
        // Predicated region
        $region21: #{watermark_loss.1} parent=19 // pred_check
          %p157 = pneg %p46
        $region22: #{watermark_loss.1} parent=19 // pred_check_branch
          %159 = sbr.rel (%p157) target = $region24
        $region23: #{watermark_loss.1} parent=19 // pred_region
          %s160 = sand.u32 %s36, 1
          %s161 = scalar_lea.sflag [#allocation4], %s160
          %s162 = sand.u32 %s36, 1
          %s163 = smul.addr %s162, 512
          %s164 = scalar_lea.vmem [#allocation3], %s163
          %s165 = smul.u32 8, %s19
          %s166 = smul.u32 8, %s20
          %s168 = ssub.s32 8192, 8192
          %169 = vsyncadd %s161, %s168
          %s170 = smul.addr %s165, 8
          %s171 = sadd.s32 %s166, %s170
          %s172 = smul.addr %s171, 128
          %s173 = scalar_lea.hbm %s0, %s172
          %s174 = sshll.u32 %s164, 4
          %s175 = int_to_ptr.vmem [resolvable:$true] %s174
          %180 = dma.hbm_to_vmem [thread:$0]  %s173, 8192, %s175, %s161, 1024, 1024, 64
        $region24: #{watermark_loss.1} parent=19 // pred_fallthru
          _
        // Predicated region
        $region25: #{watermark_loss.1} parent=19 // pred_check
          %p181 = pneg %p98
        $region26: #{watermark_loss.1} parent=19 // pred_check_branch
          %183 = sbr.rel (%p181) target = $region28
        $region27: #{watermark_loss.1} parent=19 // pred_region
          %s184 = smul.u32 8, %s19
          %p185 = scmp.lt.s32.totalorder %s184, 15
          %s186 = scalar_select %p185, %s184, 15
          %s187 = smul.addr %s186, 8
          %s188 = scalar_lea.vmem %s2, %s187
          %s189 = smul.u32 8, %s19
        $region28: #{watermark_loss.1} parent=19 // pred_fallthru
          _
      $region20: #{watermark_loss.1} parent=5 // pred_fallthru
        _
      %p190 = scmp.le.s32.totalorder 1, %s12
      %p191 = scmp.lt.s32.totalorder %s12, 3
      %p192 = pnand %p190, %p191
      %p193 = pneg %p192
      // Predicated region
      $region29: #{watermark_loss.1} parent=5 // pred_check
        _
      $region30: #{watermark_loss.1} parent=5 // pred_check_branch
        %195 = sbr.rel (%p192) target = $region32
      $region31: #{watermark_loss.1} parent=5 // pred_region
        %s196 = ssub.s32 %s12, 1
        %s197 = sand.u32 %s39, 1
        %s198 = scalar_lea.sflag [#allocation4], %s197
        %s199 = sand.u32 %s39, 1
        %s200 = smul.addr %s199, 512
        %s201 = scalar_lea.vmem [#allocation3], %s200
        // Predicated region
        $region33: #{watermark_loss.1} parent=31 // pred_check
          %p202 = pneg %p52
        $region34: #{watermark_loss.1} parent=31 // pred_check_branch
          %204 = sbr.rel (%p202) target = $region36
        $region35: #{watermark_loss.1} parent=31 // pred_region
          %205 = dma.done %s198, 8192
        $region36: #{watermark_loss.1} parent=31 // pred_fallthru
          _
        %s206 = sand.u32 %s39, 1
        %s207 = scalar_lea.sflag [#allocation4], %s206
        %s208 = sand.u32 %s39, 1
        %s209 = smul.addr %s208, 512
        %s210 = scalar_lea.vmem [#allocation3], %s209
        %p211 = pneg %p52
        %p212 = pneg %p49
        %s213 = smul.u32 8, %s22
        %p214 = scmp.lt.s32.totalorder %s213, 7
        %s215 = scalar_select %p214, %s213, 7
        %s216 = scalar_lea.vmem %s1, %s215
        %p217 = pneg %p78
        %p218 = pneg %p75
        %s219 = smul.u32 8, %s21
        %p220 = scmp.lt.s32.totalorder %s219, 15
        %s221 = scalar_select %p220, %s219, 15
        %s222 = smul.addr %s221, 8
        %s223 = scalar_lea.vmem %s2, %s222
        %p224 = pneg %p104
        %p225 = pneg %p101
        %p226 = pneg %p130
        %p227 = pneg %p127
        %s228 = smul.u32 8, %s21
        %p229 = scmp.lt.s32.totalorder %s228, 15
        %s230 = scalar_select %p229, %s228, 15
        %s231 = smul.addr %s230, 8
        %s232 = scalar_lea.vmem %s3, %s231
        %s233 = smul.u32 8, %s21
        %s234 = smul.u32 8, %s22
        %s235 = smul.u32 8, %s22
        %p236 = scmp.lt.s32.totalorder %s235, 7
        %s237 = scalar_select %p236, %s235, 7
        %s238 = scalar_lea.vmem %s1, %s237
        %s239 = smul.u32 8, %s22
        %s240 = smul.u32 8, %s21
        %p241 = scmp.lt.s32.totalorder %s240, 15
        %s242 = scalar_select %p241, %s240, 15
        %s243 = smul.addr %s242, 8
        %s244 = scalar_lea.vmem %s2, %s243
        %s245 = smul.u32 8, %s21
        %s246 = smul.u32 8, %s21
        %p247 = scmp.lt.s32.totalorder %s246, 15
        %s248 = scalar_select %p247, %s246, 15
        %s249 = smul.addr %s248, 8
        %s250 = scalar_lea.vmem %s3, %s249
        %s251 = smul.u32 8, %s21
        %p252 = scmp.eq.s32.totalorder %s22, 0
        // Predicated region
        $region37: #{watermark_loss.1} parent=31 // pred_check
          %p253 = pneg %p252
        $region38: #{watermark_loss.1} parent=31 // pred_check_branch
          %255 = sbr.rel (%p253) target = $region40
        $region39: #{watermark_loss.1} parent=31 // pred_region
          %256 = vst [vmem:[#allocation2] sm:$0xff] 0.0
          %257 = vst [vmem:[#allocation2 + $0x8] sm:$0xff] 0.0
          %258 = vst [vmem:[#allocation2 + $0x10] sm:$0xff] 0.0
          %259 = vst [vmem:[#allocation2 + $0x18] sm:$0xff] 0.0
          %260 = vst [vmem:[#allocation2 + $0x20] sm:$0xff] 0.0
          %261 = vst [vmem:[#allocation2 + $0x28] sm:$0xff] 0.0
          %262 = vst [vmem:[#allocation2 + $0x30] sm:$0xff] 0.0
          %263 = vst [vmem:[#allocation2 + $0x38] sm:$0xff] 0.0
        $region40: #{watermark_loss.1} parent=31 // pred_fallthru
          _
        %v264 = vld [vmem:[%s201] sm:$0xff]
        %v265 = vld [vmem:[%s201 + $0x40] sm:$0xff]
        %v266 = vld [vmem:[%s201 + $0x80] sm:$0xff]
        %v267 = vld [vmem:[%s201 + $0xc0] sm:$0xff]
        %v268 = vld [vmem:[%s201 + $0x100] sm:$0xff]
        %v269 = vld [vmem:[%s201 + $0x140] sm:$0xff]
        %v270 = vld [vmem:[%s201 + $0x180] sm:$0xff]
        %v271 = vld [vmem:[%s201 + $0x1c0] sm:$0xff]
        %v272 = vld [vmem:[%s238] sm:$0x1]
        %v274 = vlaneseq
        %v275 = vshrl.u32 %v274, 7
        %v276 = vsub.s32 0, %v275
        %v277 = vrot.slane %v272, %v276
        %v279 = vmul.f32 %v264, %v277
        %v280 = vmul.f32 %v265, %v277
        %v281 = vmul.f32 %v266, %v277
        %v282 = vmul.f32 %v267, %v277
        %v283 = vmul.f32 %v268, %v277
        %v284 = vmul.f32 %v269, %v277
        %v285 = vmul.f32 %v270, %v277
        %v286 = vmul.f32 %v271, %v277
        %v287 = vld [vmem:[#allocation2] sm:$0xff]
        %v288 = vld [vmem:[#allocation2 + $0x8] sm:$0xff]
        %v289 = vld [vmem:[#allocation2 + $0x10] sm:$0xff]
        %v290 = vld [vmem:[#allocation2 + $0x18] sm:$0xff]
        %v291 = vld [vmem:[#allocation2 + $0x20] sm:$0xff]
        %v292 = vld [vmem:[#allocation2 + $0x28] sm:$0xff]
        %v293 = vld [vmem:[#allocation2 + $0x30] sm:$0xff]
        %v294 = vld [vmem:[#allocation2 + $0x38] sm:$0xff]
        %v295 = vadd.f32 %v287, %v279
        %v296 = vadd.f32 %v288, %v280
        %v297 = vadd.f32 %v289, %v281
        %v298 = vadd.f32 %v290, %v282
        %v299 = vadd.f32 %v291, %v283
        %v300 = vadd.f32 %v292, %v284
        %v301 = vadd.f32 %v293, %v285
        %v302 = vadd.f32 %v294, %v286
        %303 = vst [vmem:[#allocation2] sm:$0xff] %v295
        %304 = vst [vmem:[#allocation2 + $0x8] sm:$0xff] %v296
        %305 = vst [vmem:[#allocation2 + $0x10] sm:$0xff] %v297
        %306 = vst [vmem:[#allocation2 + $0x18] sm:$0xff] %v298
        %307 = vst [vmem:[#allocation2 + $0x20] sm:$0xff] %v299
        %308 = vst [vmem:[#allocation2 + $0x28] sm:$0xff] %v300
        %309 = vst [vmem:[#allocation2 + $0x30] sm:$0xff] %v301
        %310 = vst [vmem:[#allocation2 + $0x38] sm:$0xff] %v302
        %s311 = scalar_lea.vmem %s201, 8 [#allocation3]
        %v312 = vld [vmem:[%s311] sm:$0xff]
        %v313 = vld [vmem:[%s311 + $0x40] sm:$0xff]
        %v314 = vld [vmem:[%s311 + $0x80] sm:$0xff]
        %v315 = vld [vmem:[%s311 + $0xc0] sm:$0xff]
        %v316 = vld [vmem:[%s311 + $0x100] sm:$0xff]
        %v317 = vld [vmem:[%s311 + $0x140] sm:$0xff]
        %v318 = vld [vmem:[%s311 + $0x180] sm:$0xff]
        %v319 = vld [vmem:[%s311 + $0x1c0] sm:$0xff]
        %s320 = scalar_lea.vmem %s238, 1
        %v321 = vld [vmem:[%s320] sm:$0x1]
        %v323 = vlaneseq
        %v324 = vshrl.u32 %v323, 7
        %v325 = vsub.s32 0, %v324
        %v326 = vrot.slane %v321, %v325
        %v328 = vmul.f32 %v312, %v326
        %v329 = vmul.f32 %v313, %v326
        %v330 = vmul.f32 %v314, %v326
        %v331 = vmul.f32 %v315, %v326
        %v332 = vmul.f32 %v316, %v326
        %v333 = vmul.f32 %v317, %v326
        %v334 = vmul.f32 %v318, %v326
        %v335 = vmul.f32 %v319, %v326
        %v336 = vld [vmem:[#allocation2] sm:$0xff]
        %v337 = vld [vmem:[#allocation2 + $0x8] sm:$0xff]
        %v338 = vld [vmem:[#allocation2 + $0x10] sm:$0xff]
        %v339 = vld [vmem:[#allocation2 + $0x18] sm:$0xff]
        %v340 = vld [vmem:[#allocation2 + $0x20] sm:$0xff]
        %v341 = vld [vmem:[#allocation2 + $0x28] sm:$0xff]
        %v342 = vld [vmem:[#allocation2 + $0x30] sm:$0xff]
        %v343 = vld [vmem:[#allocation2 + $0x38] sm:$0xff]
        %v344 = vadd.f32 %v336, %v328
        %v345 = vadd.f32 %v337, %v329
        %v346 = vadd.f32 %v338, %v330
        %v347 = vadd.f32 %v339, %v331
        %v348 = vadd.f32 %v340, %v332
        %v349 = vadd.f32 %v341, %v333
        %v350 = vadd.f32 %v342, %v334
        %v351 = vadd.f32 %v343, %v335
        %352 = vst [vmem:[#allocation2] sm:$0xff] %v344
        %353 = vst [vmem:[#allocation2 + $0x8] sm:$0xff] %v345
        %354 = vst [vmem:[#allocation2 + $0x10] sm:$0xff] %v346
        %355 = vst [vmem:[#allocation2 + $0x18] sm:$0xff] %v347
        %356 = vst [vmem:[#allocation2 + $0x20] sm:$0xff] %v348
        %357 = vst [vmem:[#allocation2 + $0x28] sm:$0xff] %v349
        %358 = vst [vmem:[#allocation2 + $0x30] sm:$0xff] %v350
        %359 = vst [vmem:[#allocation2 + $0x38] sm:$0xff] %v351
        %s360 = scalar_lea.vmem %s201, 16 [#allocation3]
        %v361 = vld [vmem:[%s360] sm:$0xff]
        %v362 = vld [vmem:[%s360 + $0x40] sm:$0xff]
        %v363 = vld [vmem:[%s360 + $0x80] sm:$0xff]
        %v364 = vld [vmem:[%s360 + $0xc0] sm:$0xff]
        %v365 = vld [vmem:[%s360 + $0x100] sm:$0xff]
        %v366 = vld [vmem:[%s360 + $0x140] sm:$0xff]
        %v367 = vld [vmem:[%s360 + $0x180] sm:$0xff]
        %v368 = vld [vmem:[%s360 + $0x1c0] sm:$0xff]
        %s369 = scalar_lea.vmem %s238, 2
        %v370 = vld [vmem:[%s369] sm:$0x1]
        %v372 = vlaneseq
        %v373 = vshrl.u32 %v372, 7
        %v374 = vsub.s32 0, %v373
        %v375 = vrot.slane %v370, %v374
        %v377 = vmul.f32 %v361, %v375
        %v378 = vmul.f32 %v362, %v375
        %v379 = vmul.f32 %v363, %v375
        %v380 = vmul.f32 %v364, %v375
        %v381 = vmul.f32 %v365, %v375
        %v382 = vmul.f32 %v366, %v375
        %v383 = vmul.f32 %v367, %v375
        %v384 = vmul.f32 %v368, %v375
        %v385 = vld [vmem:[#allocation2] sm:$0xff]
        %v386 = vld [vmem:[#allocation2 + $0x8] sm:$0xff]
        %v387 = vld [vmem:[#allocation2 + $0x10] sm:$0xff]
        %v388 = vld [vmem:[#allocation2 + $0x18] sm:$0xff]
        %v389 = vld [vmem:[#allocation2 + $0x20] sm:$0xff]
        %v390 = vld [vmem:[#allocation2 + $0x28] sm:$0xff]
        %v391 = vld [vmem:[#allocation2 + $0x30] sm:$0xff]
        %v392 = vld [vmem:[#allocation2 + $0x38] sm:$0xff]
        %v393 = vadd.f32 %v385, %v377
        %v394 = vadd.f32 %v386, %v378
        %v395 = vadd.f32 %v387, %v379
        %v396 = vadd.f32 %v388, %v380
        %v397 = vadd.f32 %v389, %v381
        %v398 = vadd.f32 %v390, %v382
        %v399 = vadd.f32 %v391, %v383
        %v400 = vadd.f32 %v392, %v384
        %401 = vst [vmem:[#allocation2] sm:$0xff] %v393
        %402 = vst [vmem:[#allocation2 + $0x8] sm:$0xff] %v394
        %403 = vst [vmem:[#allocation2 + $0x10] sm:$0xff] %v395
        %404 = vst [vmem:[#allocation2 + $0x18] sm:$0xff] %v396
        %405 = vst [vmem:[#allocation2 + $0x20] sm:$0xff] %v397
        %406 = vst [vmem:[#allocation2 + $0x28] sm:$0xff] %v398
        %407 = vst [vmem:[#allocation2 + $0x30] sm:$0xff] %v399
        %408 = vst [vmem:[#allocation2 + $0x38] sm:$0xff] %v400
        %s409 = scalar_lea.vmem %s201, 24 [#allocation3]
        %v410 = vld [vmem:[%s409] sm:$0xff]
        %v411 = vld [vmem:[%s409 + $0x40] sm:$0xff]
        %v412 = vld [vmem:[%s409 + $0x80] sm:$0xff]
        %v413 = vld [vmem:[%s409 + $0xc0] sm:$0xff]
        %v414 = vld [vmem:[%s409 + $0x100] sm:$0xff]
        %v415 = vld [vmem:[%s409 + $0x140] sm:$0xff]
        %v416 = vld [vmem:[%s409 + $0x180] sm:$0xff]
        %v417 = vld [vmem:[%s409 + $0x1c0] sm:$0xff]
        %s418 = scalar_lea.vmem %s238, 3
        %v419 = vld [vmem:[%s418] sm:$0x1]
        %v421 = vlaneseq
        %v422 = vshrl.u32 %v421, 7
        %v423 = vsub.s32 0, %v422
        %v424 = vrot.slane %v419, %v423
        %v426 = vmul.f32 %v410, %v424
        %v427 = vmul.f32 %v411, %v424
        %v428 = vmul.f32 %v412, %v424
        %v429 = vmul.f32 %v413, %v424
        %v430 = vmul.f32 %v414, %v424
        %v431 = vmul.f32 %v415, %v424
        %v432 = vmul.f32 %v416, %v424
        %v433 = vmul.f32 %v417, %v424
        %v434 = vld [vmem:[#allocation2] sm:$0xff]
        %v435 = vld [vmem:[#allocation2 + $0x8] sm:$0xff]
        %v436 = vld [vmem:[#allocation2 + $0x10] sm:$0xff]
        %v437 = vld [vmem:[#allocation2 + $0x18] sm:$0xff]
        %v438 = vld [vmem:[#allocation2 + $0x20] sm:$0xff]
        %v439 = vld [vmem:[#allocation2 + $0x28] sm:$0xff]
        %v440 = vld [vmem:[#allocation2 + $0x30] sm:$0xff]
        %v441 = vld [vmem:[#allocation2 + $0x38] sm:$0xff]
        %v442 = vadd.f32 %v434, %v426
        %v443 = vadd.f32 %v435, %v427
        %v444 = vadd.f32 %v436, %v428
        %v445 = vadd.f32 %v437, %v429
        %v446 = vadd.f32 %v438, %v430
        %v447 = vadd.f32 %v439, %v431
        %v448 = vadd.f32 %v440, %v432
        %v449 = vadd.f32 %v441, %v433
        %450 = vst [vmem:[#allocation2] sm:$0xff] %v442
        %451 = vst [vmem:[#allocation2 + $0x8] sm:$0xff] %v443
        %452 = vst [vmem:[#allocation2 + $0x10] sm:$0xff] %v444
        %453 = vst [vmem:[#allocation2 + $0x18] sm:$0xff] %v445
        %454 = vst [vmem:[#allocation2 + $0x20] sm:$0xff] %v446
        %455 = vst [vmem:[#allocation2 + $0x28] sm:$0xff] %v447
        %456 = vst [vmem:[#allocation2 + $0x30] sm:$0xff] %v448
        %457 = vst [vmem:[#allocation2 + $0x38] sm:$0xff] %v449
        %s458 = scalar_lea.vmem %s201, 32 [#allocation3]
        %v459 = vld [vmem:[%s458] sm:$0xff]
        %v460 = vld [vmem:[%s458 + $0x40] sm:$0xff]
        %v461 = vld [vmem:[%s458 + $0x80] sm:$0xff]
        %v462 = vld [vmem:[%s458 + $0xc0] sm:$0xff]
        %v463 = vld [vmem:[%s458 + $0x100] sm:$0xff]
        %v464 = vld [vmem:[%s458 + $0x140] sm:$0xff]
        %v465 = vld [vmem:[%s458 + $0x180] sm:$0xff]
        %v466 = vld [vmem:[%s458 + $0x1c0] sm:$0xff]
        %s467 = scalar_lea.vmem %s238, 4
        %v468 = vld [vmem:[%s467] sm:$0x1]
        %v470 = vlaneseq
        %v471 = vshrl.u32 %v470, 7
        %v472 = vsub.s32 0, %v471
        %v473 = vrot.slane %v468, %v472
        %v475 = vmul.f32 %v459, %v473
        %v476 = vmul.f32 %v460, %v473
        %v477 = vmul.f32 %v461, %v473
        %v478 = vmul.f32 %v462, %v473
        %v479 = vmul.f32 %v463, %v473
        %v480 = vmul.f32 %v464, %v473
        %v481 = vmul.f32 %v465, %v473
        %v482 = vmul.f32 %v466, %v473
        %v483 = vld [vmem:[#allocation2] sm:$0xff]
        %v484 = vld [vmem:[#allocation2 + $0x8] sm:$0xff]
        %v485 = vld [vmem:[#allocation2 + $0x10] sm:$0xff]
        %v486 = vld [vmem:[#allocation2 + $0x18] sm:$0xff]
        %v487 = vld [vmem:[#allocation2 + $0x20] sm:$0xff]
        %v488 = vld [vmem:[#allocation2 + $0x28] sm:$0xff]
        %v489 = vld [vmem:[#allocation2 + $0x30] sm:$0xff]
        %v490 = vld [vmem:[#allocation2 + $0x38] sm:$0xff]
        %v491 = vadd.f32 %v483, %v475
        %v492 = vadd.f32 %v484, %v476
        %v493 = vadd.f32 %v485, %v477
        %v494 = vadd.f32 %v486, %v478
        %v495 = vadd.f32 %v487, %v479
        %v496 = vadd.f32 %v488, %v480
        %v497 = vadd.f32 %v489, %v481
        %v498 = vadd.f32 %v490, %v482
        %499 = vst [vmem:[#allocation2] sm:$0xff] %v491
        %500 = vst [vmem:[#allocation2 + $0x8] sm:$0xff] %v492
        %501 = vst [vmem:[#allocation2 + $0x10] sm:$0xff] %v493
        %502 = vst [vmem:[#allocation2 + $0x18] sm:$0xff] %v494
        %503 = vst [vmem:[#allocation2 + $0x20] sm:$0xff] %v495
        %504 = vst [vmem:[#allocation2 + $0x28] sm:$0xff] %v496
        %505 = vst [vmem:[#allocation2 + $0x30] sm:$0xff] %v497
        %506 = vst [vmem:[#allocation2 + $0x38] sm:$0xff] %v498
        %s507 = scalar_lea.vmem %s201, 40 [#allocation3]
        %v508 = vld [vmem:[%s507] sm:$0xff]
        %v509 = vld [vmem:[%s507 + $0x40] sm:$0xff]
        %v510 = vld [vmem:[%s507 + $0x80] sm:$0xff]
        %v511 = vld [vmem:[%s507 + $0xc0] sm:$0xff]
        %v512 = vld [vmem:[%s507 + $0x100] sm:$0xff]
        %v513 = vld [vmem:[%s507 + $0x140] sm:$0xff]
        %v514 = vld [vmem:[%s507 + $0x180] sm:$0xff]
        %v515 = vld [vmem:[%s507 + $0x1c0] sm:$0xff]
        %s516 = scalar_lea.vmem %s238, 5
        %v517 = vld [vmem:[%s516] sm:$0x1]
        %v519 = vlaneseq
        %v520 = vshrl.u32 %v519, 7
        %v521 = vsub.s32 0, %v520
        %v522 = vrot.slane %v517, %v521
        %v524 = vmul.f32 %v508, %v522
        %v525 = vmul.f32 %v509, %v522
        %v526 = vmul.f32 %v510, %v522
        %v527 = vmul.f32 %v511, %v522
        %v528 = vmul.f32 %v512, %v522
        %v529 = vmul.f32 %v513, %v522
        %v530 = vmul.f32 %v514, %v522
        %v531 = vmul.f32 %v515, %v522
        %v532 = vld [vmem:[#allocation2] sm:$0xff]
        %v533 = vld [vmem:[#allocation2 + $0x8] sm:$0xff]
        %v534 = vld [vmem:[#allocation2 + $0x10] sm:$0xff]
        %v535 = vld [vmem:[#allocation2 + $0x18] sm:$0xff]
        %v536 = vld [vmem:[#allocation2 + $0x20] sm:$0xff]
        %v537 = vld [vmem:[#allocation2 + $0x28] sm:$0xff]
        %v538 = vld [vmem:[#allocation2 + $0x30] sm:$0xff]
        %v539 = vld [vmem:[#allocation2 + $0x38] sm:$0xff]
        %v540 = vadd.f32 %v532, %v524
        %v541 = vadd.f32 %v533, %v525
        %v542 = vadd.f32 %v534, %v526
        %v543 = vadd.f32 %v535, %v527
        %v544 = vadd.f32 %v536, %v528
        %v545 = vadd.f32 %v537, %v529
        %v546 = vadd.f32 %v538, %v530
        %v547 = vadd.f32 %v539, %v531
        %548 = vst [vmem:[#allocation2] sm:$0xff] %v540
        %549 = vst [vmem:[#allocation2 + $0x8] sm:$0xff] %v541
        %550 = vst [vmem:[#allocation2 + $0x10] sm:$0xff] %v542
        %551 = vst [vmem:[#allocation2 + $0x18] sm:$0xff] %v543
        %552 = vst [vmem:[#allocation2 + $0x20] sm:$0xff] %v544
        %553 = vst [vmem:[#allocation2 + $0x28] sm:$0xff] %v545
        %554 = vst [vmem:[#allocation2 + $0x30] sm:$0xff] %v546
        %555 = vst [vmem:[#allocation2 + $0x38] sm:$0xff] %v547
        %s556 = scalar_lea.vmem %s201, 48 [#allocation3]
        %v557 = vld [vmem:[%s556] sm:$0xff]
        %v558 = vld [vmem:[%s556 + $0x40] sm:$0xff]
        %v559 = vld [vmem:[%s556 + $0x80] sm:$0xff]
        %v560 = vld [vmem:[%s556 + $0xc0] sm:$0xff]
        %v561 = vld [vmem:[%s556 + $0x100] sm:$0xff]
        %v562 = vld [vmem:[%s556 + $0x140] sm:$0xff]
        %v563 = vld [vmem:[%s556 + $0x180] sm:$0xff]
        %v564 = vld [vmem:[%s556 + $0x1c0] sm:$0xff]
        %s565 = scalar_lea.vmem %s238, 6
        %v566 = vld [vmem:[%s565] sm:$0x1]
        %v568 = vlaneseq
        %v569 = vshrl.u32 %v568, 7
        %v570 = vsub.s32 0, %v569
        %v571 = vrot.slane %v566, %v570
        %v573 = vmul.f32 %v557, %v571
        %v574 = vmul.f32 %v558, %v571
        %v575 = vmul.f32 %v559, %v571
        %v576 = vmul.f32 %v560, %v571
        %v577 = vmul.f32 %v561, %v571
        %v578 = vmul.f32 %v562, %v571
        %v579 = vmul.f32 %v563, %v571
        %v580 = vmul.f32 %v564, %v571
        %v581 = vld [vmem:[#allocation2] sm:$0xff]
        %v582 = vld [vmem:[#allocation2 + $0x8] sm:$0xff]
        %v583 = vld [vmem:[#allocation2 + $0x10] sm:$0xff]
        %v584 = vld [vmem:[#allocation2 + $0x18] sm:$0xff]
        %v585 = vld [vmem:[#allocation2 + $0x20] sm:$0xff]
        %v586 = vld [vmem:[#allocation2 + $0x28] sm:$0xff]
        %v587 = vld [vmem:[#allocation2 + $0x30] sm:$0xff]
        %v588 = vld [vmem:[#allocation2 + $0x38] sm:$0xff]
        %v589 = vadd.f32 %v581, %v573
        %v590 = vadd.f32 %v582, %v574
        %v591 = vadd.f32 %v583, %v575
        %v592 = vadd.f32 %v584, %v576
        %v593 = vadd.f32 %v585, %v577
        %v594 = vadd.f32 %v586, %v578
        %v595 = vadd.f32 %v587, %v579
        %v596 = vadd.f32 %v588, %v580
        %597 = vst [vmem:[#allocation2] sm:$0xff] %v589
        %598 = vst [vmem:[#allocation2 + $0x8] sm:$0xff] %v590
        %599 = vst [vmem:[#allocation2 + $0x10] sm:$0xff] %v591
        %600 = vst [vmem:[#allocation2 + $0x18] sm:$0xff] %v592
        %601 = vst [vmem:[#allocation2 + $0x20] sm:$0xff] %v593
        %602 = vst [vmem:[#allocation2 + $0x28] sm:$0xff] %v594
        %603 = vst [vmem:[#allocation2 + $0x30] sm:$0xff] %v595
        %604 = vst [vmem:[#allocation2 + $0x38] sm:$0xff] %v596
        %s605 = scalar_lea.vmem %s201, 56 [#allocation3]
        %v606 = vld [vmem:[%s605] sm:$0xff]
        %v607 = vld [vmem:[%s605 + $0x40] sm:$0xff]
        %v608 = vld [vmem:[%s605 + $0x80] sm:$0xff]
        %v609 = vld [vmem:[%s605 + $0xc0] sm:$0xff]
        %v610 = vld [vmem:[%s605 + $0x100] sm:$0xff]
        %v611 = vld [vmem:[%s605 + $0x140] sm:$0xff]
        %v612 = vld [vmem:[%s605 + $0x180] sm:$0xff]
        %v613 = vld [vmem:[%s605 + $0x1c0] sm:$0xff]
        %s614 = scalar_lea.vmem %s238, 7
        %v615 = vld [vmem:[%s614] sm:$0x1]
        %v617 = vlaneseq
        %v618 = vshrl.u32 %v617, 7
        %v619 = vsub.s32 0, %v618
        %v620 = vrot.slane %v615, %v619
        %v622 = vmul.f32 %v606, %v620
        %v623 = vmul.f32 %v607, %v620
        %v624 = vmul.f32 %v608, %v620
        %v625 = vmul.f32 %v609, %v620
        %v626 = vmul.f32 %v610, %v620
        %v627 = vmul.f32 %v611, %v620
        %v628 = vmul.f32 %v612, %v620
        %v629 = vmul.f32 %v613, %v620
        %v630 = vld [vmem:[#allocation2] sm:$0xff]
        %v631 = vld [vmem:[#allocation2 + $0x8] sm:$0xff]
        %v632 = vld [vmem:[#allocation2 + $0x10] sm:$0xff]
        %v633 = vld [vmem:[#allocation2 + $0x18] sm:$0xff]
        %v634 = vld [vmem:[#allocation2 + $0x20] sm:$0xff]
        %v635 = vld [vmem:[#allocation2 + $0x28] sm:$0xff]
        %v636 = vld [vmem:[#allocation2 + $0x30] sm:$0xff]
        %v637 = vld [vmem:[#allocation2 + $0x38] sm:$0xff]
        %v638 = vadd.f32 %v630, %v622
        %v639 = vadd.f32 %v631, %v623
        %v640 = vadd.f32 %v632, %v624
        %v641 = vadd.f32 %v633, %v625
        %v642 = vadd.f32 %v634, %v626
        %v643 = vadd.f32 %v635, %v627
        %v644 = vadd.f32 %v636, %v628
        %v645 = vadd.f32 %v637, %v629
        %646 = vst [vmem:[#allocation2] sm:$0xff] %v638
        %647 = vst [vmem:[#allocation2 + $0x8] sm:$0xff] %v639
        %648 = vst [vmem:[#allocation2 + $0x10] sm:$0xff] %v640
        %649 = vst [vmem:[#allocation2 + $0x18] sm:$0xff] %v641
        %650 = vst [vmem:[#allocation2 + $0x20] sm:$0xff] %v642
        %651 = vst [vmem:[#allocation2 + $0x28] sm:$0xff] %v643
        %652 = vst [vmem:[#allocation2 + $0x30] sm:$0xff] %v644
        %653 = vst [vmem:[#allocation2 + $0x38] sm:$0xff] %v645
        // Predicated region
        $region41: #{watermark_loss.1} parent=31 // pred_check
          %p654 = pneg %p252
        $region42: #{watermark_loss.1} parent=31 // pred_check_branch
          %656 = sbr.rel (%p654) target = $region44
        $region43: #{watermark_loss.1} parent=31 // pred_region
          %v657 = vld [vmem:[#allocation2] sm:$0xff]
          %v658 = vld [vmem:[#allocation2 + $0x8] sm:$0xff]
          %v659 = vld [vmem:[#allocation2 + $0x10] sm:$0xff]
          %v660 = vld [vmem:[#allocation2 + $0x18] sm:$0xff]
          %v661 = vld [vmem:[#allocation2 + $0x20] sm:$0xff]
          %v662 = vld [vmem:[#allocation2 + $0x28] sm:$0xff]
          %v663 = vld [vmem:[#allocation2 + $0x30] sm:$0xff]
          %v664 = vld [vmem:[#allocation2 + $0x38] sm:$0xff]
          %665 = vadd.xlane.f32.xlu0 %v657
          %v666 = vpop.xlane.xlu0 %665
          %667 = vadd.xlane.f32.xlu0 %v658
          %v668 = vpop.xlane.xlu0 %667
          %669 = vadd.xlane.f32.xlu0 %v659
          %v670 = vpop.xlane.xlu0 %669
          %671 = vadd.xlane.f32.xlu0 %v660
          %v672 = vpop.xlane.xlu0 %671
          %673 = vadd.xlane.f32.xlu0 %v661
          %v674 = vpop.xlane.xlu0 %673
          %675 = vadd.xlane.f32.xlu0 %v662
          %v676 = vpop.xlane.xlu0 %675
          %677 = vadd.xlane.f32.xlu0 %v663
          %v678 = vpop.xlane.xlu0 %677
          %679 = vadd.xlane.f32.xlu0 %v664
          %v680 = vpop.xlane.xlu0 %679
          %v681 = vld [vmem:[%s244] sm:$0xff]
          %v682 = vld [vmem:[%s244 + $0x8] sm:$0xff]
          %v683 = vld [vmem:[%s244 + $0x10] sm:$0xff]
          %v684 = vld [vmem:[%s244 + $0x18] sm:$0xff]
          %v685 = vld [vmem:[%s244 + $0x20] sm:$0xff]
          %v686 = vld [vmem:[%s244 + $0x28] sm:$0xff]
          %v687 = vld [vmem:[%s244 + $0x30] sm:$0xff]
          %v688 = vld [vmem:[%s244 + $0x38] sm:$0xff]
          %v689 = vmax.f32 %v666, 0.0
          %v690 = vmax.f32 %v668, 0.0
          %v691 = vmax.f32 %v670, 0.0
          %v692 = vmax.f32 %v672, 0.0
          %v693 = vmax.f32 %v674, 0.0
          %v694 = vmax.f32 %v676, 0.0
          %v695 = vmax.f32 %v678, 0.0
          %v696 = vmax.f32 %v680, 0.0
          %v697 = vmul.f32 %v681, %v666
          %v698 = vmul.f32 %v682, %v668
          %v699 = vmul.f32 %v683, %v670
          %v700 = vmul.f32 %v684, %v672
          %v701 = vmul.f32 %v685, %v674
          %v702 = vmul.f32 %v686, %v676
          %v703 = vmul.f32 %v687, %v678
          %v704 = vmul.f32 %v688, %v680
          %v705 = vsub.f32 %v689, %v697
          %v706 = vsub.f32 %v690, %v698
          %v707 = vsub.f32 %v691, %v699
          %v708 = vsub.f32 %v692, %v700
          %v709 = vsub.f32 %v693, %v701
          %v710 = vsub.f32 %v694, %v702
          %v711 = vsub.f32 %v695, %v703
          %v712 = vsub.f32 %v696, %v704
          %v713 = vand.u32 2147483647, %v666
          %v714 = vand.u32 2147483647, %v668
          %v715 = vand.u32 2147483647, %v670
          %v716 = vand.u32 2147483647, %v672
          %v717 = vand.u32 2147483647, %v674
          %v718 = vand.u32 2147483647, %v676
          %v719 = vand.u32 2147483647, %v678
          %v720 = vand.u32 2147483647, %v680
          %v721 = vsub.f32 0.0, %v713
          %v722 = vsub.f32 0.0, %v714
          %v723 = vsub.f32 0.0, %v715
          %v724 = vsub.f32 0.0, %v716
          %v725 = vsub.f32 0.0, %v717
          %v726 = vsub.f32 0.0, %v718
          %v727 = vsub.f32 0.0, %v719
          %v728 = vsub.f32 0.0, %v720
          %v729 = vmul.f32 %v721, 1.442695
          %v730 = vpow.pop %v729
          %v731 = vmul.f32 %v722, 1.442695
          %v732 = vpow.pop %v731
          %v733 = vmul.f32 %v723, 1.442695
          %v734 = vpow.pop %v733
          %v735 = vmul.f32 %v724, 1.442695
          %v736 = vpow.pop %v735
          %v737 = vmul.f32 %v725, 1.442695
          %v738 = vpow.pop %v737
          %v739 = vmul.f32 %v726, 1.442695
          %v740 = vpow.pop %v739
          %v741 = vmul.f32 %v727, 1.442695
          %v742 = vpow.pop %v741
          %v743 = vmul.f32 %v728, 1.442695
          %v744 = vpow.pop %v743
          %v745 = vadd.f32 %v730, 1.0
          %v746 = vlog2.pop %v745
          %v747 = vmul.f32 %v746, 0.6931472
          %v748 = vmul.f32 -0.5, %v730
          %v749 = vadd.f32 %v748, 1.0
          %v750 = vmul.f32 %v749, %v730
          %v751 = vand.u32 2147483647, %v730
          %vm752 = vcmp.lt.f32.partialorder %v751, 0.0004427343
          %v753 = vsel %vm752, %v750, %v747
          %v754 = vadd.f32 %v732, 1.0
          %v755 = vlog2.pop %v754
          %v756 = vmul.f32 %v755, 0.6931472
          %v757 = vmul.f32 -0.5, %v732
          %v758 = vadd.f32 %v757, 1.0
          %v759 = vmul.f32 %v758, %v732
          %v760 = vand.u32 2147483647, %v732
          %vm761 = vcmp.lt.f32.partialorder %v760, 0.0004427343
          %v762 = vsel %vm761, %v759, %v756
          %v763 = vadd.f32 %v734, 1.0
          %v764 = vlog2.pop %v763
          %v765 = vmul.f32 %v764, 0.6931472
          %v766 = vmul.f32 -0.5, %v734
          %v767 = vadd.f32 %v766, 1.0
          %v768 = vmul.f32 %v767, %v734
          %v769 = vand.u32 2147483647, %v734
          %vm770 = vcmp.lt.f32.partialorder %v769, 0.0004427343
          %v771 = vsel %vm770, %v768, %v765
          %v772 = vadd.f32 %v736, 1.0
          %v773 = vlog2.pop %v772
          %v774 = vmul.f32 %v773, 0.6931472
          %v775 = vmul.f32 -0.5, %v736
          %v776 = vadd.f32 %v775, 1.0
          %v777 = vmul.f32 %v776, %v736
          %v778 = vand.u32 2147483647, %v736
          %vm779 = vcmp.lt.f32.partialorder %v778, 0.0004427343
          %v780 = vsel %vm779, %v777, %v774
          %v781 = vadd.f32 %v738, 1.0
          %v782 = vlog2.pop %v781
          %v783 = vmul.f32 %v782, 0.6931472
          %v784 = vmul.f32 -0.5, %v738
          %v785 = vadd.f32 %v784, 1.0
          %v786 = vmul.f32 %v785, %v738
          %v787 = vand.u32 2147483647, %v738
          %vm788 = vcmp.lt.f32.partialorder %v787, 0.0004427343
          %v789 = vsel %vm788, %v786, %v783
          %v790 = vadd.f32 %v740, 1.0
          %v791 = vlog2.pop %v790
          %v792 = vmul.f32 %v791, 0.6931472
          %v793 = vmul.f32 -0.5, %v740
          %v794 = vadd.f32 %v793, 1.0
          %v795 = vmul.f32 %v794, %v740
          %v796 = vand.u32 2147483647, %v740
          %vm797 = vcmp.lt.f32.partialorder %v796, 0.0004427343
          %v798 = vsel %vm797, %v795, %v792
          %v799 = vadd.f32 %v742, 1.0
          %v800 = vlog2.pop %v799
          %v801 = vmul.f32 %v800, 0.6931472
          %v802 = vmul.f32 -0.5, %v742
          %v803 = vadd.f32 %v802, 1.0
          %v804 = vmul.f32 %v803, %v742
          %v805 = vand.u32 2147483647, %v742
          %vm806 = vcmp.lt.f32.partialorder %v805, 0.0004427343
          %v807 = vsel %vm806, %v804, %v801
          %v808 = vadd.f32 %v744, 1.0
          %v809 = vlog2.pop %v808
          %v810 = vmul.f32 %v809, 0.6931472
          %v811 = vmul.f32 -0.5, %v744
          %v812 = vadd.f32 %v811, 1.0
          %v813 = vmul.f32 %v812, %v744
          %v814 = vand.u32 2147483647, %v744
          %vm815 = vcmp.lt.f32.partialorder %v814, 0.0004427343
          %v816 = vsel %vm815, %v813, %v810
          %v817 = vadd.f32 %v705, %v753
          %v818 = vadd.f32 %v706, %v762
          %v819 = vadd.f32 %v707, %v771
          %v820 = vadd.f32 %v708, %v780
          %v821 = vadd.f32 %v709, %v789
          %v822 = vadd.f32 %v710, %v798
          %v823 = vadd.f32 %v711, %v807
          %v824 = vadd.f32 %v712, %v816
          %vm825 = vcmask 7168
          %826 = vst.msk [vmem:[%s250] sm:$0xff] %vm825, %v817
          %827 = vst.msk [vmem:[%s250 + $0x8] sm:$0xff] %vm825, %v818
          %828 = vst.msk [vmem:[%s250 + $0x10] sm:$0xff] %vm825, %v819
          %829 = vst.msk [vmem:[%s250 + $0x18] sm:$0xff] %vm825, %v820
          %830 = vst.msk [vmem:[%s250 + $0x20] sm:$0xff] %vm825, %v821
          %831 = vst.msk [vmem:[%s250 + $0x28] sm:$0xff] %vm825, %v822
          %832 = vst.msk [vmem:[%s250 + $0x30] sm:$0xff] %vm825, %v823
          %833 = vst.msk [vmem:[%s250 + $0x38] sm:$0xff] %vm825, %v824
        $region44: #{watermark_loss.1} parent=31 // pred_fallthru
          _
        %s834 = smul.u32 8, %s21
        %p835 = scmp.lt.s32.totalorder %s834, 15
        %s836 = scalar_select %p835, %s834, 15
        %s837 = smul.addr %s836, 8
        %s838 = scalar_lea.vmem %s3, %s837
        // Predicated region
        $region45: #{watermark_loss.1} parent=31 // pred_check
          %p839 = pneg %p127
        $region46: #{watermark_loss.1} parent=31 // pred_check_branch
          %841 = sbr.rel (%p839) target = $region48
        $region47: #{watermark_loss.1} parent=31 // pred_region
          %s842 = smul.u32 8, %s21
        $region48: #{watermark_loss.1} parent=31 // pred_fallthru
          _
      $region32: #{watermark_loss.1} parent=5 // pred_fallthru
        _
      %p843 = scmp.le.s32.totalorder 2, %s12
      // Predicated region
      $region49: #{watermark_loss.1} parent=5 // pred_check
        %p844 = pneg %p843
      $region50: #{watermark_loss.1} parent=5 // pred_check_branch
        %846 = sbr.rel (%p844) target = $region52
      $region51: #{watermark_loss.1} parent=5 // pred_region
        %s847 = ssub.s32 %s12, 2
        // Predicated region
        $region53: #{watermark_loss.1} parent=51 // pred_check
          %p848 = pneg %p133
        $region54: #{watermark_loss.1} parent=51 // pred_check_branch
          %850 = sbr.rel (%p848) target = $region56
        $region55: #{watermark_loss.1} parent=51 // pred_region
          %s851 = smul.u32 8, %s23
          %p852 = scmp.lt.s32.totalorder %s851, 15
          %s853 = scalar_select %p852, %s851, 15
          %s854 = smul.addr %s853, 8
          %s855 = scalar_lea.vmem %s3, %s854
        $region56: #{watermark_loss.1} parent=51 // pred_fallthru
          _
      $region52: #{watermark_loss.1} parent=5 // pred_fallthru
        _
    $region6: #{watermark_loss.1} parent=1 // loop_footer
      %s16 = sadd.s32 1, %s12
    $region7: #{watermark_loss.1} parent=1 // loop_footer_branch
      %11 = sbr.rel target = $region3
    $region8: #{watermark_loss.1} parent=1 // loop_exit
      _
    %856 = vsyncpa [#allocation4], 1
    %s857 = scalar_lea.sflag [#allocation4], 1
    %858 = vsyncpa %s857, 1

</llo_original>
